<compile_context>
chip_gen: v7x
topology: tpu7x:2x2x1
jax: 0.10.0
libtpu: 0.0.40
codegen_flags: <defaults>
</compile_context>

<pallas_src>
import math

import jax
import jax.numpy as jnp
from jax import lax
from jax.experimental import pallas as pl
from jax.experimental.pallas import tpu as pltpu

IN_FEATURES = 192
_LANES = 128
_SUBLANES = 8


def _round_up(n, m):
    return ((n + m - 1) // m) * m


def _cdiv(a, b):
    return (a + b - 1) // b


def _gelu_exact(x):
    # PyTorch nn.GELU() default = exact erf-based GELU
    return 0.5 * x * (1.0 + lax.erf(x * (1.0 / math.sqrt(2.0))))


def _mlp_kernel(x_ref, w1_ref, p_ref, o_ref):
    # x_ref:  (TG, 128, 192) VMEM   -- TG*128 batch rows for this grid step
    # w1_ref: (1, 1, 192)    VMEM   -- fc1 weight, resident across grid steps
    # p_ref:  (8,) SMEM f32         -- [b1, w2, b2, w3, b3, pad, pad, pad]
    # o_ref:  (TG, 128)      VMEM   -- lane-dense per-row outputs
    x = x_ref[...]
    w1 = w1_ref[...]

    # fc1 (192 -> 1): VPU multiply + per-row lane reduction.  Batch rows land
    # on the lane axis, so the GELU/affine chain runs on dense vregs and the
    # store is an unmasked lane-dense vst.
    v1 = jnp.sum(x * w1, axis=-1) + p_ref[0]
    v2 = _gelu_exact(v1)
    # dropout (eval) = identity
    v4 = v2 * p_ref[1] + p_ref[2]            # fc2: 1->1 scalar affine
    v5 = _gelu_exact(v4)
    # dropout (eval) = identity
    o_ref[...] = v5 * p_ref[3] + p_ref[4]    # fc3: 1->1 scalar affine


def mlp_forward(x, w1, b1, w2, b2, w3, b3, *,
                block_rows=8192, min_pallas_rows=512):
    """x: (B, 192) f32 -> (B, 1) f32."""
    x = jnp.asarray(x, jnp.float32)
    B = x.shape[0]

    w2s = jnp.asarray(w2, jnp.float32).reshape(-1)[0]
    b2s = jnp.asarray(b2, jnp.float32).reshape(-1)[0]
    w3s = jnp.asarray(w3, jnp.float32).reshape(-1)[0]
    b3s = jnp.asarray(b3, jnp.float32).reshape(-1)[0]

    if B < min_pallas_rows:
        # Tiny batch: launch + pipeline overhead dominates; plain XLA is as
        # fast with zero padding work (perf-review recommendation).
        w1f = jnp.asarray(w1, jnp.float32).reshape(1, IN_FEATURES)
        b1f = jnp.asarray(b1, jnp.float32).reshape(1, 1)
        v1 = jnp.sum(x * w1f, axis=-1, keepdims=True) + b1f
        v4 = _gelu_exact(v1) * w2s + b2s
        return _gelu_exact(v4) * w3s + b3s

    # --- Pallas path -------------------------------------------------------
    # Pad only to the next 128-row multiple (required for the free reshape to
    # (G, 128, 192)); the ragged tile tail is handled by a partial last block.
    rows = _round_up(max(B, 1), _LANES)
    if rows != B:
        x = jnp.pad(x, ((0, rows - B), (0, 0)))
    G = rows // _LANES                       # number of 128-row groups

    if G <= _SUBLANES:
        # Single block equal to the full (padded) array: the (8,128) block
        # constraints are satisfied by the "equals full dim" escape.
        tg = G
    else:
        # Multi-step path: sublane dim of the output block (tg) must be a
        # multiple of 8.  Cap at ~half the groups so n_tiles >= 2 and the
        # "parallel" grid axis really splits work across v7x's 2 TensorCores.
        tg_cap = max(_SUBLANES, (block_rows // _LANES) // _SUBLANES * _SUBLANES)
        tg = min(tg_cap, _round_up(_cdiv(G, 2), _SUBLANES))
        tg = min(tg, 128)                    # keep double-buffered VMEM sane
    n_tiles = _cdiv(G, tg)

    x3 = x.reshape(G, _LANES, IN_FEATURES)   # contiguous -> free reshape
    w13 = jnp.asarray(w1, jnp.float32).reshape(1, 1, IN_FEATURES)
    params = jnp.concatenate([
        jnp.asarray(b1, jnp.float32).reshape(-1),
        w2s.reshape(1), b2s.reshape(1), w3s.reshape(1), b3s.reshape(1),
        jnp.zeros((3,), jnp.float32),
    ])

    # VMEM budget: the x tile is lane-padded 192 -> 256 inside VMEM and
    # double-buffered; don't pad features in HBM (would add 33% read traffic).
    x_tile_vmem = tg * _LANES * 256 * 4
    out_tile_vmem = tg * _LANES * 4
    vmem_need = 2 * (x_tile_vmem + out_tile_vmem) + 2 * 256 * 4 + (1 << 20)
    vmem_limit = int(min(max(vmem_need, 32 << 20), 48 << 20))

    out = pl.pallas_call(
        _mlp_kernel,
        out_shape=jax.ShapeDtypeStruct((G, _LANES), jnp.float32),
        grid_spec=pltpu.PrefetchScalarGridSpec(
            num_scalar_prefetch=0,
            grid=(n_tiles,),
            in_specs=[
                pl.BlockSpec((tg, _LANES, IN_FEATURES), lambda i: (i, 0, 0)),
                pl.BlockSpec((1, 1, IN_FEATURES), lambda i: (0, 0, 0)),
                pl.BlockSpec(memory_space=pltpu.SMEM),
            ],
            out_specs=pl.BlockSpec((tg, _LANES), lambda i: (i, 0)),
        ),
        compiler_params=pltpu.CompilerParams(
            dimension_semantics=("parallel",),
            vmem_limit_bytes=vmem_limit),
        cost_estimate=pl.CostEstimate(
            flops=2 * rows * IN_FEATURES + 10 * rows,
            transcendentals=2 * rows,
            bytes_accessed=rows * IN_FEATURES * 4 + rows * 4
                           + IN_FEATURES * 4 + 32),
    )(x3, w13, params)

    return out.reshape(rows, 1)[:B]


def _init_linear(key, out_f, in_f):
    # mimic PyTorch nn.Linear default init: U(-1/sqrt(fan_in), 1/sqrt(fan_in))
    kw, kb = jax.random.split(key)
    bound = 1.0 / math.sqrt(in_f)
    w = jax.random.uniform(kw, (out_f, in_f), jnp.float32, -bound, bound)
    b = jax.random.uniform(kb, (out_f,), jnp.float32, -bound, bound)
    return w, b


def _reference(x, w1, b1, w2, b2, w3, b3):
    # pure-JAX reference, same math path (elementwise mul + reduce for fc1)
    v1 = jnp.sum(x * w1[0][None, :], axis=-1, keepdims=True) + b1
    v4 = _gelu_exact(v1) * w2[0, 0] + b2[0]
    return _gelu_exact(v4) * w3[0, 0] + b3[0]


if __name__ == "__main__":
    key = jax.random.PRNGKey(0)
    kx1, kx2, k1, k2, k3 = jax.random.split(key, 5)

    w1, b1 = _init_linear(k1, 1, IN_FEATURES)   # fc1: (1, 192), (1,)
    w2, b2 = _init_linear(k2, 1, 1)             # fc2: (1, 1),  (1,)
    w3, b3 = _init_linear(k3, 1, 1)             # fc3: (1, 1),  (1,)

    # Case 1: the module's native shape (1, 192), forced through the Pallas
    # kernel (single padded 128-row block) so the kernel itself is exercised.
    x1 = jax.random.normal(kx1, (1, IN_FEATURES), jnp.float32)
    out1 = jax.block_until_ready(
        mlp_forward(x1, w1, b1, w2, b2, w3, b3, min_pallas_rows=0))
    ref1 = _reference(x1, w1, b1, w2, b2, w3, b3)
    assert out1.shape == (1, 1), out1.shape
    assert jnp.allclose(out1, ref1, atol=1e-5, rtol=1e-5), (out1, ref1)

    # Case 2: larger, non-aligned batch -> multi-tile pipelined path with a
    # partial last block (B=2500 -> 20 row-groups -> tile of 16 groups ->
    # 2 grid steps, second one ragged) and a >=2-tile "parallel" grid.
    B2 = 2500
    x2 = jax.random.normal(kx2, (B2, IN_FEATURES), jnp.float32)
    out2 = jax.block_until_ready(mlp_forward(x2, w1, b1, w2, b2, w3, b3))
    ref2 = _reference(x2, w1, b1, w2, b2, w3, b3)
    assert out2.shape == (B2, 1), out2.shape
    assert jnp.allclose(out2, ref2, atol=1e-5, rtol=1e-5)

    # Case 3: default small-batch XLA fallback path matches the reference too.
    out3 = jax.block_until_ready(mlp_forward(x1, w1, b1, w2, b2, w3, b3))
    assert out3.shape == (1, 1), out3.shape
    assert jnp.allclose(out3, ref1, atol=1e-5, rtol=1e-5)

    print("KERNEL_OK")
</pallas_src>

<mosaic_0001>
module attributes {stable_mosaic.version = 11 : i64} {
  func.func @_mlp_kernel(%arg0: i32, %arg1: memref<1x128x192xf32, #tpu.memory_space<vmem>>, %arg2: memref<1x1x192xf32, #tpu.memory_space<vmem>>, %arg3: memref<8xf32, #tpu.memory_space<smem>>, %arg4: memref<1x128xf32, #tpu.memory_space<vmem>>) attributes {dimension_semantics = [#tpu.dimension_semantics<parallel>], iteration_bounds = array<i64: 1>, scalar_prefetch = 0 : i64, scratch_operands = 0 : i64, tpu.core_type = #tpu.core_type<tc>, window_params = [{transform_indices = @transform_0, window_bounds = array<i64: 1, 128, 192>}, {pipeline_mode = #tpu.pipeline_mode<synchronous>, transform_indices = @transform_1, window_bounds = array<i64: 1, 1, 192>}, {transform_indices = @transform_2, window_bounds = array<i64: 8>}, {transform_indices = @transform_3, window_bounds = array<i64: 1, 128>}]} {
    %c0 = arith.constant 0 : index
    %c0_0 = arith.constant 0 : index
    %c0_1 = arith.constant 0 : index
    %0 = vector.load %arg1[%c0, %c0_0, %c0_1] : memref<1x128x192xf32, #tpu.memory_space<vmem>>, vector<1x128x192xf32>
    %c0_2 = arith.constant 0 : index
    %c0_3 = arith.constant 0 : index
    %c0_4 = arith.constant 0 : index
    %1 = vector.load %arg2[%c0_2, %c0_3, %c0_4] : memref<1x1x192xf32, #tpu.memory_space<vmem>>, vector<1x1x192xf32>
    %2 = vector.broadcast %1 : vector<1x1x192xf32> to vector<1x128x192xf32>
    %3 = arith.mulf %0, %2 : vector<1x128x192xf32>
    %cst = arith.constant dense<0.000000e+00> : vector<1x128xf32>
    %4 = vector.multi_reduction <add>, %3, %cst [2] : vector<1x128x192xf32> to vector<1x128xf32>
    %c0_5 = arith.constant 0 : index
    %5 = memref.load %arg3[%c0_5] : memref<8xf32, #tpu.memory_space<smem>>
    %6 = vector.broadcast %5 : f32 to vector<1x128xf32>
    %7 = arith.addf %4, %6 : vector<1x128xf32>
    %cst_6 = arith.constant 5.000000e-01 : f32
    %8 = vector.broadcast %cst_6 : f32 to vector<1x128xf32>
    %9 = arith.mulf %8, %7 : vector<1x128xf32>
    %cst_7 = arith.constant 0.707106769 : f32
    %10 = vector.broadcast %cst_7 : f32 to vector<1x128xf32>
    %11 = arith.mulf %7, %10 : vector<1x128xf32>
    %12 = math.erf %11 : vector<1x128xf32>
    %cst_8 = arith.constant 1.000000e+00 : f32
    %13 = vector.broadcast %cst_8 : f32 to vector<1x128xf32>
    %14 = arith.addf %13, %12 : vector<1x128xf32>
    %15 = arith.mulf %9, %14 : vector<1x128xf32>
    %c1 = arith.constant 1 : index
    %16 = memref.load %arg3[%c1] : memref<8xf32, #tpu.memory_space<smem>>
    %17 = vector.broadcast %16 : f32 to vector<1x128xf32>
    %18 = arith.mulf %15, %17 : vector<1x128xf32>
    %c2 = arith.constant 2 : index
    %19 = memref.load %arg3[%c2] : memref<8xf32, #tpu.memory_space<smem>>
    %20 = vector.broadcast %19 : f32 to vector<1x128xf32>
    %21 = arith.addf %18, %20 : vector<1x128xf32>
    %cst_9 = arith.constant 5.000000e-01 : f32
    %22 = vector.broadcast %cst_9 : f32 to vector<1x128xf32>
    %23 = arith.mulf %22, %21 : vector<1x128xf32>
    %cst_10 = arith.constant 0.707106769 : f32
    %24 = vector.broadcast %cst_10 : f32 to vector<1x128xf32>
    %25 = arith.mulf %21, %24 : vector<1x128xf32>
    %26 = math.erf %25 : vector<1x128xf32>
    %cst_11 = arith.constant 1.000000e+00 : f32
    %27 = vector.broadcast %cst_11 : f32 to vector<1x128xf32>
    %28 = arith.addf %27, %26 : vector<1x128xf32>
    %29 = arith.mulf %23, %28 : vector<1x128xf32>
    %c3 = arith.constant 3 : index
    %30 = memref.load %arg3[%c3] : memref<8xf32, #tpu.memory_space<smem>>
    %31 = vector.broadcast %30 : f32 to vector<1x128xf32>
    %32 = arith.mulf %29, %31 : vector<1x128xf32>
    %c4 = arith.constant 4 : index
    %33 = memref.load %arg3[%c4] : memref<8xf32, #tpu.memory_space<smem>>
    %34 = vector.broadcast %33 : f32 to vector<1x128xf32>
    %35 = arith.addf %32, %34 : vector<1x128xf32>
    %c0_12 = arith.constant 0 : index
    %c0_13 = arith.constant 0 : index
    %36 = vector.load %arg4[%c0_12, %c0_13] : memref<1x128xf32, #tpu.memory_space<vmem>>, vector<1x128xf32>
    tpu.vector_store %arg4[%c0_12, %c0_13], %35 {strides = array<i32>} : memref<1x128xf32, #tpu.memory_space<vmem>>, vector<1x128xf32>,
    return
  }
  func.func @transform_0(%arg0: i32) -> (i32, i32, i32) {
    %c0_i32 = arith.constant 0 : i32
    %c0_i32_0 = arith.constant 0 : i32
    %c0_i32_1 = arith.constant 0 : i32
    return %arg0, %c0_i32, %c0_i32_0 : i32, i32, i32
  }
  func.func @transform_1(%arg0: i32) -> (i32, i32, i32) {
    %c0_i32 = arith.constant 0 : i32
    %c0_i32_0 = arith.constant 0 : i32
    %c0_i32_1 = arith.constant 0 : i32
    %c0_i32_2 = arith.constant 0 : i32
    return %c0_i32, %c0_i32_0, %c0_i32_1 : i32, i32, i32
  }
  func.func @transform_2(%arg0: i32) -> i32 {
    %c0_i32 = arith.constant 0 : i32
    %c0_i32_0 = arith.constant 0 : i32
    return %c0_i32 : i32
  }
  func.func @transform_3(%arg0: i32) -> (i32, i32) {
    %c0_i32 = arith.constant 0 : i32
    %c0_i32_0 = arith.constant 0 : i32
    return %arg0, %c0_i32 : i32, i32
  }
}

</mosaic_0001>

<llo_original>
// kernel: tpu_custom_call.1
$region0: #{tpu_custom_call.1}
  #allocation0 [shape = 'u32[]', space=smem, size = 0x4, offset = 0x4, fixed_abs, tag = 'smem constant byte address 0x4 - core index']
  #allocation1 [shape = 'u32[144,128]{1,0:T(1,128)}', space=vmem, size = 0x12000, scoped, tag = 'internal scratch']
  %s0 = inlined_call_operand.vmem [shape: f32[1,128,192], index: 0, kind: input, shape index: {}]
  %s1 = inlined_call_operand.vmem [shape: f32[1,1,192], index: 1, kind: input, shape index: {}]
  %s2 = inlined_call_operand.vmem [shape: f32[8], index: 2, kind: input, shape index: {}]
  %s3 = inlined_call_operand.hbm [shape: f32[1,128], index: 3, kind: output, shape index: {}]
  %s4 = sld [smem:[#allocation0]]
  $region26: #{tpu_custom_call.1} parent=0
    _
  %s6 = ssub.s32 1, %s4
  %s7 = scalar_select 0, %s6, %s4
  $region1: #{tpu_custom_call.1} parent=0
    #allocation2 [shape = 'u8[512]{0}', space=smem, size = 0x200, scoped, tag = 'input window, operand 2, single buffered']
    #allocation3 [shape = 's32[1]{0}', space=sflag, size = 0x4, scoped, tag = 'scoped memory for tpu_custom_call.1']
    #allocation4 [shape = 's32[1]{0}', space=sflag, size = 0x4, scoped, tag = 'scoped memory for tpu_custom_call.1']
    #allocation5 [shape = 'u8[512]{0}', space=vmem, size = 0x400, scoped, tag = 'output window, operand 0, single buffered']
    %8 = vsyncpa [#allocation4], 0
    %9 = vsyncpa [#allocation3], 0
    // Predicated region
    $region2: #{tpu_custom_call.1} parent=1 // pred_check
      _
    $region3: #{tpu_custom_call.1} parent=1 // pred_check_branch
      %11 = sbr.rel (0) target = $region5
    $region4: #{tpu_custom_call.1} parent=1 // pred_region
      _
    $region5: #{tpu_custom_call.1} parent=1 // pred_fallthru
      _
    // Predicated region
    $region6: #{tpu_custom_call.1} parent=1 // pred_check
      _
    $region7: #{tpu_custom_call.1} parent=1 // pred_check_branch
      %13 = sbr.rel (0) target = $region9
    $region8: #{tpu_custom_call.1} parent=1 // pred_region
      _
    $region9: #{tpu_custom_call.1} parent=1 // pred_fallthru
      _
    // Predicated region
    $region10: #{tpu_custom_call.1} parent=1 // pred_check
      _
    $region11: #{tpu_custom_call.1} parent=1 // pred_check_branch
      %15 = sbr.rel (0) target = $region13
    $region12: #{tpu_custom_call.1} parent=1 // pred_region
      %s17 = ssub.s32 16, 16
      %18 = vsyncadd [#allocation4], %s17
      %s20 = sshll.u32 %s2, 4
      %s21 = int_to_ptr.vmem [resolvable:$true] %s20
      %23 = dma.vmem_to_smem %s21, 16, [#allocation2], [#allocation4]
    $region13: #{tpu_custom_call.1} parent=1 // pred_fallthru
      _
    // Predicated region
    $region14: #{tpu_custom_call.1} parent=1 // pred_check
      _
    $region15: #{tpu_custom_call.1} parent=1 // pred_check_branch
      %25 = sbr.rel (0) target = $region17
    $region16: #{tpu_custom_call.1} parent=1 // pred_region
      %26 = dma.done [#allocation4], 16
    $region17: #{tpu_custom_call.1} parent=1 // pred_fallthru
      _
    %27 = sfence
    %v28 = vld [vmem:[%s0] sm:$0xff]
    %v29 = vld [vmem:[%s0 + $0x8] sm:$0xff]
    %v30 = vld [vmem:[%s0 + $0x10] sm:$0xff]
    %v31 = vld [vmem:[%s0 + $0x18] sm:$0xff]
    %v32 = vld [vmem:[%s0 + $0x20] sm:$0xff]
    %v33 = vld [vmem:[%s0 + $0x28] sm:$0xff]
    %v34 = vld [vmem:[%s0 + $0x30] sm:$0xff]
    %v35 = vld [vmem:[%s0 + $0x38] sm:$0xff]
    %v36 = vld [vmem:[%s0 + $0x40] sm:$0xff]
    %v37 = vld [vmem:[%s0 + $0x48] sm:$0xff]
    %v38 = vld [vmem:[%s0 + $0x50] sm:$0xff]
    %v39 = vld [vmem:[%s0 + $0x58] sm:$0xff]
    %v40 = vld [vmem:[%s0 + $0x60] sm:$0xff]
    %v41 = vld [vmem:[%s0 + $0x68] sm:$0xff]
    %v42 = vld [vmem:[%s0 + $0x70] sm:$0xff]
    %v43 = vld [vmem:[%s0 + $0x78] sm:$0xff]
    %v44 = vld [vmem:[%s0 + $0x80] sm:$0xff]
    %v45 = vld [vmem:[%s0 + $0x88] sm:$0xff]
    %v46 = vld [vmem:[%s0 + $0x90] sm:$0xff]
    %v47 = vld [vmem:[%s0 + $0x98] sm:$0xff]
    %v48 = vld [vmem:[%s0 + $0xa0] sm:$0xff]
    %v49 = vld [vmem:[%s0 + $0xa8] sm:$0xff]
    %v50 = vld [vmem:[%s0 + $0xb0] sm:$0xff]
    %v51 = vld [vmem:[%s0 + $0xb8] sm:$0xff]
    %v52 = vld [vmem:[%s0 + $0xc0] sm:$0xff]
    %v53 = vld [vmem:[%s0 + $0xc8] sm:$0xff]
    %v54 = vld [vmem:[%s0 + $0xd0] sm:$0xff]
    %v55 = vld [vmem:[%s0 + $0xd8] sm:$0xff]
    %v56 = vld [vmem:[%s0 + $0xe0] sm:$0xff]
    %v57 = vld [vmem:[%s0 + $0xe8] sm:$0xff]
    %v58 = vld [vmem:[%s0 + $0xf0] sm:$0xff]
    %v59 = vld [vmem:[%s0 + $0xf8] sm:$0xff]
    %v60 = vld [vmem:[%s1] sm:$0x3]
    %v62 = vlaneseq
    %v63 = vshrl.u32 %v62, 7
    %v64 = vsub.s32 0, %v63
    %v65 = vrot.slane %v60, %v64
    %v66 = vlaneseq
    %v67 = vshrl.u32 %v66, 7
    %v68 = vsub.s32 1, %v67
    %v69 = vrot.slane %v60, %v68
    %v72 = vmul.f32 %v28, %v65
    %v73 = vmul.f32 %v29, %v69
    %v74 = vmul.f32 %v30, %v65
    %v75 = vmul.f32 %v31, %v69
    %v76 = vmul.f32 %v32, %v65
    %v77 = vmul.f32 %v33, %v69
    %v78 = vmul.f32 %v34, %v65
    %v79 = vmul.f32 %v35, %v69
    %v80 = vmul.f32 %v36, %v65
    %v81 = vmul.f32 %v37, %v69
    %v82 = vmul.f32 %v38, %v65
    %v83 = vmul.f32 %v39, %v69
    %v84 = vmul.f32 %v40, %v65
    %v85 = vmul.f32 %v41, %v69
    %v86 = vmul.f32 %v42, %v65
    %v87 = vmul.f32 %v43, %v69
    %v88 = vmul.f32 %v44, %v65
    %v89 = vmul.f32 %v45, %v69
    %v90 = vmul.f32 %v46, %v65
    %v91 = vmul.f32 %v47, %v69
    %v92 = vmul.f32 %v48, %v65
    %v93 = vmul.f32 %v49, %v69
    %v94 = vmul.f32 %v50, %v65
    %v95 = vmul.f32 %v51, %v69
    %v96 = vmul.f32 %v52, %v65
    %v97 = vmul.f32 %v53, %v69
    %v98 = vmul.f32 %v54, %v65
    %v99 = vmul.f32 %v55, %v69
    %v100 = vmul.f32 %v56, %v65
    %v101 = vmul.f32 %v57, %v69
    %v102 = vmul.f32 %v58, %v65
    %v103 = vmul.f32 %v59, %v69
    %vm104 = vcmask 523264
    %v105 = vsel %vm104, %v73, 0.0
    %v106 = vadd.f32 %v72, %v105
    %107 = vadd.xlane.f32.xlu0 %v106
    %v108 = vpop.xlane.xlu0 %107
    %v109 = vsel %vm104, %v75, 0.0
    %v110 = vadd.f32 %v74, %v109
    %111 = vadd.xlane.f32.xlu0 %v110
    %v112 = vpop.xlane.xlu0 %111
    %v113 = vsel %vm104, %v77, 0.0
    %v114 = vadd.f32 %v76, %v113
    %115 = vadd.xlane.f32.xlu0 %v114
    %v116 = vpop.xlane.xlu0 %115
    %v117 = vsel %vm104, %v79, 0.0
    %v118 = vadd.f32 %v78, %v117
    %119 = vadd.xlane.f32.xlu0 %v118
    %v120 = vpop.xlane.xlu0 %119
    %v121 = vsel %vm104, %v81, 0.0
    %v122 = vadd.f32 %v80, %v121
    %123 = vadd.xlane.f32.xlu0 %v122
    %v124 = vpop.xlane.xlu0 %123
    %v125 = vsel %vm104, %v83, 0.0
    %v126 = vadd.f32 %v82, %v125
    %127 = vadd.xlane.f32.xlu0 %v126
    %v128 = vpop.xlane.xlu0 %127
    %v129 = vsel %vm104, %v85, 0.0
    %v130 = vadd.f32 %v84, %v129
    %131 = vadd.xlane.f32.xlu0 %v130
    %v132 = vpop.xlane.xlu0 %131
    %v133 = vsel %vm104, %v87, 0.0
    %v134 = vadd.f32 %v86, %v133
    %135 = vadd.xlane.f32.xlu0 %v134
    %v136 = vpop.xlane.xlu0 %135
    %v137 = vsel %vm104, %v89, 0.0
    %v138 = vadd.f32 %v88, %v137
    %139 = vadd.xlane.f32.xlu0 %v138
    %v140 = vpop.xlane.xlu0 %139
    %v141 = vsel %vm104, %v91, 0.0
    %v142 = vadd.f32 %v90, %v141
    %143 = vadd.xlane.f32.xlu0 %v142
    %v144 = vpop.xlane.xlu0 %143
    %v145 = vsel %vm104, %v93, 0.0
    %v146 = vadd.f32 %v92, %v145
    %147 = vadd.xlane.f32.xlu0 %v146
    %v148 = vpop.xlane.xlu0 %147
    %v149 = vsel %vm104, %v95, 0.0
    %v150 = vadd.f32 %v94, %v149
    %151 = vadd.xlane.f32.xlu0 %v150
    %v152 = vpop.xlane.xlu0 %151
    %v153 = vsel %vm104, %v97, 0.0
    %v154 = vadd.f32 %v96, %v153
    %155 = vadd.xlane.f32.xlu0 %v154
    %v156 = vpop.xlane.xlu0 %155
    %v157 = vsel %vm104, %v99, 0.0
    %v158 = vadd.f32 %v98, %v157
    %159 = vadd.xlane.f32.xlu0 %v158
    %v160 = vpop.xlane.xlu0 %159
    %v161 = vsel %vm104, %v101, 0.0
    %v162 = vadd.f32 %v100, %v161
    %163 = vadd.xlane.f32.xlu0 %v162
    %v164 = vpop.xlane.xlu0 %163
    %v165 = vsel %vm104, %v103, 0.0
    %v166 = vadd.f32 %v102, %v165
    %167 = vadd.xlane.f32.xlu0 %v166
    %v168 = vpop.xlane.xlu0 %167
    %s169 = sld [smem:[#allocation2]]
    %v170 = vstv %s169
    %v171 = vadd.f32 %v108, %v170
    %v172 = vadd.f32 %v112, %v170
    %v173 = vadd.f32 %v116, %v170
    %v174 = vadd.f32 %v120, %v170
    %v175 = vadd.f32 %v124, %v170
    %v176 = vadd.f32 %v128, %v170
    %v177 = vadd.f32 %v132, %v170
    %v178 = vadd.f32 %v136, %v170
    %v179 = vadd.f32 %v140, %v170
    %v180 = vadd.f32 %v144, %v170
    %v181 = vadd.f32 %v148, %v170
    %v182 = vadd.f32 %v152, %v170
    %v183 = vadd.f32 %v156, %v170
    %v184 = vadd.f32 %v160, %v170
    %v185 = vadd.f32 %v164, %v170
    %v186 = vadd.f32 %v168, %v170
    %v187 = vmul.f32 %v171, 0.5
    %v188 = vmul.f32 %v172, 0.5
    %v189 = vmul.f32 %v173, 0.5
    %v190 = vmul.f32 %v174, 0.5
    %v191 = vmul.f32 %v175, 0.5
    %v192 = vmul.f32 %v176, 0.5
    %v193 = vmul.f32 %v177, 0.5
    %v194 = vmul.f32 %v178, 0.5
    %v195 = vmul.f32 %v179, 0.5
    %v196 = vmul.f32 %v180, 0.5
    %v197 = vmul.f32 %v181, 0.5
    %v198 = vmul.f32 %v182, 0.5
    %v199 = vmul.f32 %v183, 0.5
    %v200 = vmul.f32 %v184, 0.5
    %v201 = vmul.f32 %v185, 0.5
    %v202 = vmul.f32 %v186, 0.5
    %v203 = vmul.f32 %v171, 0.70710677
    %v204 = vmul.f32 %v172, 0.70710677
    %v205 = vmul.f32 %v173, 0.70710677
    %v206 = vmul.f32 %v174, 0.70710677
    %v207 = vmul.f32 %v175, 0.70710677
    %v208 = vmul.f32 %v176, 0.70710677
    %v209 = vmul.f32 %v177, 0.70710677
    %v210 = vmul.f32 %v178, 0.70710677
    %v211 = vmul.f32 %v179, 0.70710677
    %v212 = vmul.f32 %v180, 0.70710677
    %v213 = vmul.f32 %v181, 0.70710677
    %v214 = vmul.f32 %v182, 0.70710677
    %v215 = vmul.f32 %v183, 0.70710677
    %v216 = vmul.f32 %v184, 0.70710677
    %v217 = vmul.f32 %v185, 0.70710677
    %v218 = vmul.f32 %v186, 0.70710677
    %v219 = verf.f32.pop %v203
    %v220 = verf.f32.pop %v204
    %v221 = verf.f32.pop %v205
    %v222 = verf.f32.pop %v206
    %v223 = verf.f32.pop %v207
    %v224 = verf.f32.pop %v208
    %v225 = verf.f32.pop %v209
    %v226 = verf.f32.pop %v210
    %v227 = verf.f32.pop %v211
    %v228 = verf.f32.pop %v212
    %v229 = verf.f32.pop %v213
    %v230 = verf.f32.pop %v214
    %v231 = verf.f32.pop %v215
    %v232 = verf.f32.pop %v216
    %v233 = verf.f32.pop %v217
    %v234 = verf.f32.pop %v218
    %v235 = vadd.f32 %v219, 1.0
    %v236 = vadd.f32 %v220, 1.0
    %v237 = vadd.f32 %v221, 1.0
    %v238 = vadd.f32 %v222, 1.0
    %v239 = vadd.f32 %v223, 1.0
    %v240 = vadd.f32 %v224, 1.0
    %v241 = vadd.f32 %v225, 1.0
    %v242 = vadd.f32 %v226, 1.0
    %v243 = vadd.f32 %v227, 1.0
    %v244 = vadd.f32 %v228, 1.0
    %v245 = vadd.f32 %v229, 1.0
    %v246 = vadd.f32 %v230, 1.0
    %v247 = vadd.f32 %v231, 1.0
    %v248 = vadd.f32 %v232, 1.0
    %v249 = vadd.f32 %v233, 1.0
    %v250 = vadd.f32 %v234, 1.0
    %v251 = vmul.f32 %v187, %v235
    %v252 = vmul.f32 %v188, %v236
    %v253 = vmul.f32 %v189, %v237
    %v254 = vmul.f32 %v190, %v238
    %v255 = vmul.f32 %v191, %v239
    %v256 = vmul.f32 %v192, %v240
    %v257 = vmul.f32 %v193, %v241
    %v258 = vmul.f32 %v194, %v242
    %v259 = vmul.f32 %v195, %v243
    %v260 = vmul.f32 %v196, %v244
    %v261 = vmul.f32 %v197, %v245
    %v262 = vmul.f32 %v198, %v246
    %v263 = vmul.f32 %v199, %v247
    %v264 = vmul.f32 %v200, %v248
    %v265 = vmul.f32 %v201, %v249
    %v266 = vmul.f32 %v202, %v250
    %s267 = sld [smem:[#allocation2 + $0x1]]
    %v268 = vstv %s267
    %v269 = vmul.f32 %v251, %v268
    %v270 = vmul.f32 %v252, %v268
    %v271 = vmul.f32 %v253, %v268
    %v272 = vmul.f32 %v254, %v268
    %v273 = vmul.f32 %v255, %v268
    %v274 = vmul.f32 %v256, %v268
    %v275 = vmul.f32 %v257, %v268
    %v276 = vmul.f32 %v258, %v268
    %v277 = vmul.f32 %v259, %v268
    %v278 = vmul.f32 %v260, %v268
    %v279 = vmul.f32 %v261, %v268
    %v280 = vmul.f32 %v262, %v268
    %v281 = vmul.f32 %v263, %v268
    %v282 = vmul.f32 %v264, %v268
    %v283 = vmul.f32 %v265, %v268
    %v284 = vmul.f32 %v266, %v268
    %s285 = sld [smem:[#allocation2 + $0x2]]
    %v286 = vstv %s285
    %v287 = vadd.f32 %v269, %v286
    %v288 = vadd.f32 %v270, %v286
    %v289 = vadd.f32 %v271, %v286
    %v290 = vadd.f32 %v272, %v286
    %v291 = vadd.f32 %v273, %v286
    %v292 = vadd.f32 %v274, %v286
    %v293 = vadd.f32 %v275, %v286
    %v294 = vadd.f32 %v276, %v286
    %v295 = vadd.f32 %v277, %v286
    %v296 = vadd.f32 %v278, %v286
    %v297 = vadd.f32 %v279, %v286
    %v298 = vadd.f32 %v280, %v286
    %v299 = vadd.f32 %v281, %v286
    %v300 = vadd.f32 %v282, %v286
    %v301 = vadd.f32 %v283, %v286
    %v302 = vadd.f32 %v284, %v286
    %v303 = vmul.f32 %v287, 0.5
    %v304 = vmul.f32 %v288, 0.5
    %v305 = vmul.f32 %v289, 0.5
    %v306 = vmul.f32 %v290, 0.5
    %v307 = vmul.f32 %v291, 0.5
    %v308 = vmul.f32 %v292, 0.5
    %v309 = vmul.f32 %v293, 0.5
    %v310 = vmul.f32 %v294, 0.5
    %v311 = vmul.f32 %v295, 0.5
    %v312 = vmul.f32 %v296, 0.5
    %v313 = vmul.f32 %v297, 0.5
    %v314 = vmul.f32 %v298, 0.5
    %v315 = vmul.f32 %v299, 0.5
    %v316 = vmul.f32 %v300, 0.5
    %v317 = vmul.f32 %v301, 0.5
    %v318 = vmul.f32 %v302, 0.5
    %v319 = vmul.f32 %v287, 0.70710677
    %v320 = vmul.f32 %v288, 0.70710677
    %v321 = vmul.f32 %v289, 0.70710677
    %v322 = vmul.f32 %v290, 0.70710677
    %v323 = vmul.f32 %v291, 0.70710677
    %v324 = vmul.f32 %v292, 0.70710677
    %v325 = vmul.f32 %v293, 0.70710677
    %v326 = vmul.f32 %v294, 0.70710677
    %v327 = vmul.f32 %v295, 0.70710677
    %v328 = vmul.f32 %v296, 0.70710677
    %v329 = vmul.f32 %v297, 0.70710677
    %v330 = vmul.f32 %v298, 0.70710677
    %v331 = vmul.f32 %v299, 0.70710677
    %v332 = vmul.f32 %v300, 0.70710677
    %v333 = vmul.f32 %v301, 0.70710677
    %v334 = vmul.f32 %v302, 0.70710677
    %v335 = verf.f32.pop %v319
    %v336 = verf.f32.pop %v320
    %v337 = verf.f32.pop %v321
    %v338 = verf.f32.pop %v322
    %v339 = verf.f32.pop %v323
    %v340 = verf.f32.pop %v324
    %v341 = verf.f32.pop %v325
    %v342 = verf.f32.pop %v326
    %v343 = verf.f32.pop %v327
    %v344 = verf.f32.pop %v328
    %v345 = verf.f32.pop %v329
    %v346 = verf.f32.pop %v330
    %v347 = verf.f32.pop %v331
    %v348 = verf.f32.pop %v332
    %v349 = verf.f32.pop %v333
    %v350 = verf.f32.pop %v334
    %v351 = vadd.f32 %v335, 1.0
    %v352 = vadd.f32 %v336, 1.0
    %v353 = vadd.f32 %v337, 1.0
    %v354 = vadd.f32 %v338, 1.0
    %v355 = vadd.f32 %v339, 1.0
    %v356 = vadd.f32 %v340, 1.0
    %v357 = vadd.f32 %v341, 1.0
    %v358 = vadd.f32 %v342, 1.0
    %v359 = vadd.f32 %v343, 1.0
    %v360 = vadd.f32 %v344, 1.0
    %v361 = vadd.f32 %v345, 1.0
    %v362 = vadd.f32 %v346, 1.0
    %v363 = vadd.f32 %v347, 1.0
    %v364 = vadd.f32 %v348, 1.0
    %v365 = vadd.f32 %v349, 1.0
    %v366 = vadd.f32 %v350, 1.0
    %v367 = vmul.f32 %v303, %v351
    %v368 = vmul.f32 %v304, %v352
    %v369 = vmul.f32 %v305, %v353
    %v370 = vmul.f32 %v306, %v354
    %v371 = vmul.f32 %v307, %v355
    %v372 = vmul.f32 %v308, %v356
    %v373 = vmul.f32 %v309, %v357
    %v374 = vmul.f32 %v310, %v358
    %v375 = vmul.f32 %v311, %v359
    %v376 = vmul.f32 %v312, %v360
    %v377 = vmul.f32 %v313, %v361
    %v378 = vmul.f32 %v314, %v362
    %v379 = vmul.f32 %v315, %v363
    %v380 = vmul.f32 %v316, %v364
    %v381 = vmul.f32 %v317, %v365
    %v382 = vmul.f32 %v318, %v366
    %s383 = sld [smem:[#allocation2 + $0x3]]
    %v384 = vstv %s383
    %v385 = vmul.f32 %v367, %v384
    %v386 = vmul.f32 %v368, %v384
    %v387 = vmul.f32 %v369, %v384
    %v388 = vmul.f32 %v370, %v384
    %v389 = vmul.f32 %v371, %v384
    %v390 = vmul.f32 %v372, %v384
    %v391 = vmul.f32 %v373, %v384
    %v392 = vmul.f32 %v374, %v384
    %v393 = vmul.f32 %v375, %v384
    %v394 = vmul.f32 %v376, %v384
    %v395 = vmul.f32 %v377, %v384
    %v396 = vmul.f32 %v378, %v384
    %v397 = vmul.f32 %v379, %v384
    %v398 = vmul.f32 %v380, %v384
    %v399 = vmul.f32 %v381, %v384
    %v400 = vmul.f32 %v382, %v384
    %s401 = sld [smem:[#allocation2 + $0x4]]
    %v402 = vstv %s401
    %v403 = vadd.f32 %v385, %v402
    %v404 = vadd.f32 %v386, %v402
    %v405 = vadd.f32 %v387, %v402
    %v406 = vadd.f32 %v388, %v402
    %v407 = vadd.f32 %v389, %v402
    %v408 = vadd.f32 %v390, %v402
    %v409 = vadd.f32 %v391, %v402
    %v410 = vadd.f32 %v392, %v402
    %v411 = vadd.f32 %v393, %v402
    %v412 = vadd.f32 %v394, %v402
    %v413 = vadd.f32 %v395, %v402
    %v414 = vadd.f32 %v396, %v402
    %v415 = vadd.f32 %v397, %v402
    %v416 = vadd.f32 %v398, %v402
    %v417 = vadd.f32 %v399, %v402
    %v418 = vadd.f32 %v400, %v402
    %v435 = vlaneseq
    %v436 = vand.u32 %v435, 127
    %v437 = vlaneseq
    %v438 = vshrl.u32 %v437, 7
    %v439 = vsub.s32 %v436, %v438
    %v440 = vrot.slane %v403, %v439
    %v441 = vadd.s32 %v436, 4294967288
    %v442 = vlaneseq
    %v443 = vshrl.u32 %v442, 7
    %v444 = vsub.s32 %v441, %v443
    %v445 = vrot.slane %v404, %v444
    %vm446 = vcmask 130112
    %v447 = vsel %vm446, %v445, %v440
    %v448 = vadd.s32 %v436, 4294967280
    %v449 = vlaneseq
    %v450 = vshrl.u32 %v449, 7
    %v451 = vsub.s32 %v448, %v450
    %v452 = vrot.slane %v405, %v451
    %vm453 = vcmask 195712
    %v454 = vsel %vm453, %v452, %v447
    %v455 = vadd.s32 %v436, 4294967272
    %v456 = vlaneseq
    %v457 = vshrl.u32 %v456, 7
    %v458 = vsub.s32 %v455, %v457
    %v459 = vrot.slane %v406, %v458
    %vm460 = vcmask 261312
    %v461 = vsel %vm460, %v459, %v454
    %v462 = vadd.s32 %v436, 4294967264
    %v463 = vlaneseq
    %v464 = vshrl.u32 %v463, 7
    %v465 = vsub.s32 %v462, %v464
    %v466 = vrot.slane %v407, %v465
    %vm467 = vcmask 326912
    %v468 = vsel %vm467, %v466, %v461
    %v469 = vadd.s32 %v436, 4294967256
    %v470 = vlaneseq
    %v471 = vshrl.u32 %v470, 7
    %v472 = vsub.s32 %v469, %v471
    %v473 = vrot.slane %v408, %v472
    %vm474 = vcmask 392512
    %v475 = vsel %vm474, %v473, %v468
    %v476 = vadd.s32 %v436, 4294967248
    %v477 = vlaneseq
    %v478 = vshrl.u32 %v477, 7
    %v479 = vsub.s32 %v476, %v478
    %v480 = vrot.slane %v409, %v479
    %vm481 = vcmask 458112
    %v482 = vsel %vm481, %v480, %v475
    %v483 = vadd.s32 %v436, 4294967240
    %v484 = vlaneseq
    %v485 = vshrl.u32 %v484, 7
    %v486 = vsub.s32 %v483, %v485
    %v487 = vrot.slane %v410, %v486
    %vm488 = vcmask 523712
    %v489 = vsel %vm488, %v487, %v482
    %v490 = vadd.s32 %v436, 4294967232
    %v491 = vlaneseq
    %v492 = vshrl.u32 %v491, 7
    %v493 = vsub.s32 %v490, %v492
    %v494 = vrot.slane %v411, %v493
    %vm495 = vcmask 589312
    %v496 = vsel %vm495, %v494, %v489
    %v497 = vadd.s32 %v436, 4294967224
    %v498 = vlaneseq
    %v499 = vshrl.u32 %v498, 7
    %v500 = vsub.s32 %v497, %v499
    %v501 = vrot.slane %v412, %v500
    %vm502 = vcmask 654912
    %v503 = vsel %vm502, %v501, %v496
    %v504 = vadd.s32 %v436, 4294967216
    %v505 = vlaneseq
    %v506 = vshrl.u32 %v505, 7
    %v507 = vsub.s32 %v504, %v506
    %v508 = vrot.slane %v413, %v507
    %vm509 = vcmask 720512
    %v510 = vsel %vm509, %v508, %v503
    %v511 = vadd.s32 %v436, 4294967208
    %v512 = vlaneseq
    %v513 = vshrl.u32 %v512, 7
    %v514 = vsub.s32 %v511, %v513
    %v515 = vrot.slane %v414, %v514
    %vm516 = vcmask 786112
    %v517 = vsel %vm516, %v515, %v510
    %v518 = vadd.s32 %v436, 4294967200
    %v519 = vlaneseq
    %v520 = vshrl.u32 %v519, 7
    %v521 = vsub.s32 %v518, %v520
    %v522 = vrot.slane %v415, %v521
    %vm523 = vcmask 851712
    %v524 = vsel %vm523, %v522, %v517
    %v525 = vadd.s32 %v436, 4294967192
    %v526 = vlaneseq
    %v527 = vshrl.u32 %v526, 7
    %v528 = vsub.s32 %v525, %v527
    %v529 = vrot.slane %v416, %v528
    %vm530 = vcmask 917312
    %v531 = vsel %vm530, %v529, %v524
    %v532 = vadd.s32 %v436, 4294967184
    %v533 = vlaneseq
    %v534 = vshrl.u32 %v533, 7
    %v535 = vsub.s32 %v532, %v534
    %v536 = vrot.slane %v417, %v535
    %vm537 = vcmask 982912
    %v538 = vsel %vm537, %v536, %v531
    %v539 = vadd.s32 %v436, 4294967176
    %v540 = vlaneseq
    %v541 = vshrl.u32 %v540, 7
    %v542 = vsub.s32 %v539, %v541
    %v543 = vrot.slane %v418, %v542
    %vm544 = vcmask 1048512
    %v545 = vsel %vm544, %v543, %v538
    %547 = vst [vmem:[#allocation5] sm:$0x1] %v545
    // Predicated region
    $region18: #{tpu_custom_call.1} parent=1 // pred_check
      _
    $region19: #{tpu_custom_call.1} parent=1 // pred_check_branch
      %549 = sbr.rel (0) target = $region21
    $region20: #{tpu_custom_call.1} parent=1 // pred_region
      %s551 = ssub.s32 16, 16
      %552 = vsyncadd [#allocation3], %s551
      %s554 = sshll.u32 [#allocation5], 4
      %s555 = int_to_ptr.vmem [resolvable:$true] %s554
      %557 = dma.vmem_to_hbm [thread:$0]  %s555, 16, %s3, [#allocation3]
    $region21: #{tpu_custom_call.1} parent=1 // pred_fallthru
      _
    // Predicated region
    $region22: #{tpu_custom_call.1} parent=1 // pred_check
      _
    $region23: #{tpu_custom_call.1} parent=1 // pred_check_branch
      %559 = sbr.rel (0) target = $region25
    $region24: #{tpu_custom_call.1} parent=1 // pred_region
      %560 = dma.done [#allocation3], 16
    $region25: #{tpu_custom_call.1} parent=1 // pred_fallthru
      _
    %561 = vsyncpa [#allocation3], 1
    %562 = vsyncpa [#allocation4], 1

</llo_original>
